<compile_context>
chip_gen: v7x
topology: tpu7x:2x2x1
jax: 0.10.0
libtpu: 0.0.40
codegen_flags: <defaults>
</compile_context>

<pallas_src>
import functools

import jax
import jax.numpy as jnp
from jax.experimental import pallas as pl
from jax.experimental.pallas import tpu as pltpu


def _round_up(x, m):
    return ((x + m - 1) // m) * m


def _vmem_capacity_bytes():
    try:
        return int(pltpu.get_tpu_info().vmem_capacity_bytes)
    except Exception:
        return 64 << 20   # conservative fallback: v7x per-TensorCore VMEM


def _working_set_bytes(tm, D, Rcat, in_item, q_item, v_item, mxu_item):
    # Streamed tiles (X, q-residual, v-residual, q-out, v-out), double-buffered.
    act = 2 * tm * D * (in_item + 2 * q_item + 2 * v_item)
    # Constant weights / bias, single-buffered (pl.Buffered(1)).
    w = (D * Rcat + Rcat * 2 * D) * mxu_item + 2 * D * 4
    # In-kernel temporaries: xb (mxu dtype), h (f32 + mxu cast), d (f32, 2D).
    tmp = tm * D * mxu_item + tm * Rcat * (4 + mxu_item) + tm * 2 * D * 4
    return act + w + tmp


def lora_qv_kernel(x_ref, q_ref, v_ref, a_ref, b_ref, bias_ref,
                   qo_ref, vo_ref, *, mxu_dtype):
    D = q_ref.shape[1]
    # Base activations: DMA'd once per tile, pushed through the MXU once.
    xb = x_ref[...].astype(mxu_dtype)                                # (TM, D)
    # Fused down-projection for both branches: (TM, D) @ (D, Rcat) -> (TM, Rcat)
    h = jnp.dot(xb, a_ref[...], preferred_element_type=jnp.float32)
    # Fused up-projection: (TM, Rcat) @ (Rcat, 2D) -> (TM, 2D); block-diagonal
    # B_cat keeps the Q / V deltas in the two D-wide halves.
    d = jnp.dot(h.astype(mxu_dtype), b_ref[...],
                preferred_element_type=jnp.float32)
    d = d + bias_ref[...]                                            # scaled bias
    qo_ref[...] = (q_ref[...].astype(jnp.float32) + d[:, :D]).astype(qo_ref.dtype)
    vo_ref[...] = (v_ref[...].astype(jnp.float32) + d[:, D:]).astype(vo_ref.dtype)


def lora_qv_forward(X, query, value, params, *, lora_alpha=1.0,
                    tile_m=512, mxu_dtype=jnp.bfloat16):
    """X, query, value: (batch, seq, hidden). Returns (query_out, value_out)."""
    B, S, D = X.shape
    N = B * S
    Xf = X.reshape(N, D)
    Qf = query.reshape(N, D)
    Vf = value.reshape(N, D)

    # ---- weight prep: fold scaling, fuse Q/V ranks into one padded slab ----
    Aq, Bq, bq = params["Aq"], params["Bq"], params["bq"]   # (rq,D),(D,rq),(D,)
    Av, Bv, bv = params["Av"], params["Bv"], params["bv"]
    rq, rv = Aq.shape[0], Av.shape[0]
    sq = (lora_alpha / rq) if lora_alpha > 1.5 else 1.0
    sv = (lora_alpha / rv) if lora_alpha > 1.5 else 1.0
    Rcat = _round_up(rq + rv, 128)      # combined rank, padded once to 128 lanes

    A_cat = jnp.zeros((D, Rcat), mxu_dtype)
    A_cat = A_cat.at[:, :rq].set((Aq * sq).T.astype(mxu_dtype))
    A_cat = A_cat.at[:, rq:rq + rv].set((Av * sv).T.astype(mxu_dtype))

    B_cat = jnp.zeros((Rcat, 2 * D), mxu_dtype)              # block-diagonal
    B_cat = B_cat.at[:rq, :D].set(Bq.T.astype(mxu_dtype))
    B_cat = B_cat.at[rq:rq + rv, D:].set(Bv.T.astype(mxu_dtype))

    b_cat = jnp.concatenate([bq * sq, bv * sv]).reshape(1, 2 * D).astype(jnp.float32)

    # ---- tile selection from the actual device VMEM capacity ----
    in_item = jnp.dtype(X.dtype).itemsize
    q_item = jnp.dtype(query.dtype).itemsize
    v_item = jnp.dtype(value.dtype).itemsize
    mxu_item = jnp.dtype(mxu_dtype).itemsize

    vmem_cap = _vmem_capacity_bytes()
    budget = int(vmem_cap * 0.85)

    tm = max(8, _round_up(min(tile_m, max(N, 1)), 8))
    tm = min(tm, _round_up(N, 8))
    if N > 8:                 # keep >= 2 grid steps so both v7x cores stream
        tm = min(tm, max(8, _round_up(pl.cdiv(N, 2), 8)))
    while tm > 8 and _working_set_bytes(tm, D, Rcat, in_item, q_item,
                                        v_item, mxu_item) > budget:
        tm = max(8, _round_up(tm // 2, 8))

    ws = _working_set_bytes(tm, D, Rcat, in_item, q_item, v_item, mxu_item)
    vmem_limit = int(min(max(ws + (8 << 20), 32 << 20), vmem_cap))

    grid = (pl.cdiv(N, tm),)   # ragged last block handled by Pallas (no pad)

    kernel = functools.partial(lora_qv_kernel, mxu_dtype=mxu_dtype)

    q2, v2 = pl.pallas_call(
        kernel,
        out_shape=(jax.ShapeDtypeStruct((N, D), query.dtype),
                   jax.ShapeDtypeStruct((N, D), value.dtype)),
        grid_spec=pltpu.PrefetchScalarGridSpec(
            num_scalar_prefetch=0,
            grid=grid,
            in_specs=[
                pl.BlockSpec((tm, D), lambda i: (i, 0)),     # X (shared base)
                pl.BlockSpec((tm, D), lambda i: (i, 0)),     # query residual
                pl.BlockSpec((tm, D), lambda i: (i, 0)),     # value residual
                pl.BlockSpec((D, Rcat), lambda i: (0, 0),    # [Aq|Av]^T, scaled
                             pipeline_mode=pl.Buffered(1)),
                pl.BlockSpec((Rcat, 2 * D), lambda i: (0, 0),  # blockdiag B^T
                             pipeline_mode=pl.Buffered(1)),
                pl.BlockSpec((1, 2 * D), lambda i: (0, 0),   # [bq|bv] * scaling
                             pipeline_mode=pl.Buffered(1)),
            ],
            out_specs=[pl.BlockSpec((tm, D), lambda i: (i, 0)),
                       pl.BlockSpec((tm, D), lambda i: (i, 0))],
        ),
        # residuals are read-before-write per block -> safe in-place update
        input_output_aliases={1: 0, 2: 1},
        compiler_params=pltpu.CompilerParams(
            dimension_semantics=("parallel",),
            vmem_limit_bytes=vmem_limit),
    )(Xf, Qf, Vf, A_cat, B_cat, b_cat)

    return q2.reshape(B, S, D), v2.reshape(B, S, D)


# ---------------------------------------------------------------------------
# Parameter init (Houlsby-style truncated gaussian, so lora_B is nonzero and
# the correctness check is non-trivial) and a pure-JAX reference.
# ---------------------------------------------------------------------------
def _truncated_gaussian(key, shape, std):
    return jnp.fmod(jax.random.normal(key, shape, jnp.float32), 2.0) * std


def init_lora_params(key, d_model, q_rank, v_rank, std=0.01):
    ks = jax.random.split(key, 6)
    return {
        "Aq": _truncated_gaussian(ks[0], (q_rank, d_model), std),  # (r, in)
        "Bq": _truncated_gaussian(ks[1], (d_model, q_rank), std),  # (out, r)
        "bq": _truncated_gaussian(ks[2], (d_model,), std),
        "Av": _truncated_gaussian(ks[3], (v_rank, d_model), std),
        "Bv": _truncated_gaussian(ks[4], (d_model, v_rank), std),
        "bv": _truncated_gaussian(ks[5], (d_model,), std),
    }


def lora_reference(X, query, value, params, *, lora_alpha=1.0):
    def branch(base, A, Bm, b):
        r = A.shape[0]
        s = (lora_alpha / r) if lora_alpha > 1.5 else 1.0
        out = jnp.einsum("bnp,rp->bnr", base, A * s)
        out = jnp.einsum("bnr,pr->bnp", out, Bm)
        return out + b * s

    q = query + branch(X, params["Aq"], params["Bq"], params["bq"])
    v = value + branch(X, params["Av"], params["Bv"], params["bv"])
    return q, v


if __name__ == "__main__":
    def run_case(key, batch, seq, hidden, q_rank, v_rank, lora_alpha, tile_m):
        kx, kq, kv, kp = jax.random.split(key, 4)
        X = jax.random.normal(kx, (batch, seq, hidden), jnp.float32)
        query = jax.random.normal(kq, (batch, seq, hidden), jnp.float32)
        value = jax.random.normal(kv, (batch, seq, hidden), jnp.float32)
        params = init_lora_params(kp, hidden, q_rank, v_rank)

        # Compute the reference first: the kernel aliases (may donate) the
        # residual buffers into its outputs.
        q_ref, v_ref = lora_reference(X, query, value, params,
                                      lora_alpha=lora_alpha)
        q_ref, v_ref = jax.block_until_ready((q_ref, v_ref))

        q_out, v_out = lora_qv_forward(X, query, value, params,
                                       lora_alpha=lora_alpha, tile_m=tile_m)
        q_out, v_out = jax.block_until_ready((q_out, v_out))

        assert q_out.shape == (batch, seq, hidden) and q_out.dtype == jnp.float32
        assert v_out.shape == (batch, seq, hidden) and v_out.dtype == jnp.float32
        # bf16 MXU path -> modest tolerance vs the f32 reference.
        assert jnp.allclose(q_out, q_ref, atol=2e-3, rtol=2e-3), "query mismatch"
        assert jnp.allclose(v_out, v_ref, atol=2e-3, rtol=2e-3), "value mismatch"

    key = jax.random.PRNGKey(0)
    k1, k2 = jax.random.split(key)

    # Small shapes implied by the module (hidden=32, ranks 4/8, alpha=16 > 1.5).
    run_case(k1, batch=2, seq=8, hidden=32, q_rank=4, v_rank=8,
             lora_alpha=16.0, tile_m=512)
    # Exercises real (8,128) lane tiling and the ragged (N % tm != 0) last block.
    run_case(k2, batch=2, seq=65, hidden=256, q_rank=4, v_rank=8,
             lora_alpha=16.0, tile_m=512)

    print("KERNEL_OK")
</pallas_src>

<mosaic_0001>
module attributes {stable_mosaic.version = 11 : i64} {
  func.func @lora_qv_kernel(%arg0: i32, %arg1: memref<8x32xf32, #tpu.memory_space<vmem>>, %arg2: memref<8x32xf32, #tpu.memory_space<vmem>>, %arg3: memref<8x32xf32, #tpu.memory_space<vmem>>, %arg4: memref<32x128xbf16, #tpu.memory_space<vmem>>, %arg5: memref<128x64xbf16, #tpu.memory_space<vmem>>, %arg6: memref<1x64xf32, #tpu.memory_space<vmem>>, %arg7: memref<8x32xf32, #tpu.memory_space<vmem>>, %arg8: memref<8x32xf32, #tpu.memory_space<vmem>>) attributes {dimension_semantics = [#tpu.dimension_semantics<parallel>], iteration_bounds = array<i64: 2>, scalar_prefetch = 0 : i64, scratch_operands = 0 : i64, tpu.core_type = #tpu.core_type<tc>, window_params = [{transform_indices = @transform_0, window_bounds = array<i64: 8, 32>}, {transform_indices = @transform_1, window_bounds = array<i64: 8, 32>}, {transform_indices = @transform_2, window_bounds = array<i64: 8, 32>}, {pipeline_mode = #tpu.pipeline_mode<synchronous>, transform_indices = @transform_3, window_bounds = array<i64: 32, 128>}, {pipeline_mode = #tpu.pipeline_mode<synchronous>, transform_indices = @transform_4, window_bounds = array<i64: 128, 64>}, {pipeline_mode = #tpu.pipeline_mode<synchronous>, transform_indices = @transform_5, window_bounds = array<i64: 1, 64>}, {transform_indices = @transform_6, window_bounds = array<i64: 8, 32>}, {transform_indices = @transform_7, window_bounds = array<i64: 8, 32>}]} {
    %c0 = arith.constant 0 : index
    %c0_0 = arith.constant 0 : index
    %0 = vector.load %arg1[%c0, %c0_0] : memref<8x32xf32, #tpu.memory_space<vmem>>, vector<8x32xf32>
    %1 = arith.truncf %0 : vector<8x32xf32> to vector<8x32xbf16>
    %c0_1 = arith.constant 0 : index
    %c0_2 = arith.constant 0 : index
    %2 = vector.load %arg4[%c0_1, %c0_2] : memref<32x128xbf16, #tpu.memory_space<vmem>>, vector<32x128xbf16>
    %cst = arith.constant dense<0.000000e+00> : vector<8x128xf32>
    %3 = tpu.matmul %1, %2, %cst {dimension_numbers = #tpu.dot_dimension_numbers<[1], [0], [0], [1], [0, 0, 1, 1], [], []>} : vector<8x32xbf16>, vector<32x128xbf16>, vector<8x128xf32> -> vector<8x128xf32>
    %4 = arith.truncf %3 : vector<8x128xf32> to vector<8x128xbf16>
    %c0_3 = arith.constant 0 : index
    %c0_4 = arith.constant 0 : index
    %5 = vector.load %arg5[%c0_3, %c0_4] : memref<128x64xbf16, #tpu.memory_space<vmem>>, vector<128x64xbf16>
    %cst_5 = arith.constant dense<0.000000e+00> : vector<8x64xf32>
    %6 = tpu.matmul %4, %5, %cst_5 {dimension_numbers = #tpu.dot_dimension_numbers<[1], [0], [0], [1], [0, 0, 1, 1], [], []>} : vector<8x128xbf16>, vector<128x64xbf16>, vector<8x64xf32> -> vector<8x64xf32>
    %c0_6 = arith.constant 0 : index
    %c0_7 = arith.constant 0 : index
    %7 = vector.load %arg6[%c0_6, %c0_7] : memref<1x64xf32, #tpu.memory_space<vmem>>, vector<1x64xf32>
    %8 = vector.broadcast %7 : vector<1x64xf32> to vector<8x64xf32>
    %9 = arith.addf %6, %8 : vector<8x64xf32>
    %c0_8 = arith.constant 0 : index
    %c0_9 = arith.constant 0 : index
    %10 = vector.load %arg2[%c0_8, %c0_9] : memref<8x32xf32, #tpu.memory_space<vmem>>, vector<8x32xf32>
    %11 = vector.extract_strided_slice %9 {offsets = [0, 0], sizes = [8, 32], strides = [1, 1]} : vector<8x64xf32> to vector<8x32xf32>
    %12 = arith.addf %10, %11 : vector<8x32xf32>
    %c0_10 = arith.constant 0 : index
    %c0_11 = arith.constant 0 : index
    %13 = vector.load %arg7[%c0_10, %c0_11] : memref<8x32xf32, #tpu.memory_space<vmem>>, vector<8x32xf32>
    tpu.vector_store %arg7[%c0_10, %c0_11], %12 {strides = array<i32>} : memref<8x32xf32, #tpu.memory_space<vmem>>, vector<8x32xf32>,
    %c0_12 = arith.constant 0 : index
    %c0_13 = arith.constant 0 : index
    %14 = vector.load %arg3[%c0_12, %c0_13] : memref<8x32xf32, #tpu.memory_space<vmem>>, vector<8x32xf32>
    %15 = vector.extract_strided_slice %9 {offsets = [0, 32], sizes = [8, 32], strides = [1, 1]} : vector<8x64xf32> to vector<8x32xf32>
    %16 = arith.addf %14, %15 : vector<8x32xf32>
    %c0_14 = arith.constant 0 : index
    %c0_15 = arith.constant 0 : index
    %17 = vector.load %arg8[%c0_14, %c0_15] : memref<8x32xf32, #tpu.memory_space<vmem>>, vector<8x32xf32>
    tpu.vector_store %arg8[%c0_14, %c0_15], %16 {strides = array<i32>} : memref<8x32xf32, #tpu.memory_space<vmem>>, vector<8x32xf32>,
    return
  }
  func.func @transform_0(%arg0: i32) -> (i32, i32) {
    %c0_i32 = arith.constant 0 : i32
    %c0_i32_0 = arith.constant 0 : i32
    return %arg0, %c0_i32 : i32, i32
  }
  func.func @transform_1(%arg0: i32) -> (i32, i32) {
    %c0_i32 = arith.constant 0 : i32
    %c0_i32_0 = arith.constant 0 : i32
    return %arg0, %c0_i32 : i32, i32
  }
  func.func @transform_2(%arg0: i32) -> (i32, i32) {
    %c0_i32 = arith.constant 0 : i32
    %c0_i32_0 = arith.constant 0 : i32
    return %arg0, %c0_i32 : i32, i32
  }
  func.func @transform_3(%arg0: i32) -> (i32, i32) {
    %c0_i32 = arith.constant 0 : i32
    %c0_i32_0 = arith.constant 0 : i32
    %c0_i32_1 = arith.constant 0 : i32
    return %c0_i32, %c0_i32_0 : i32, i32
  }
  func.func @transform_4(%arg0: i32) -> (i32, i32) {
    %c0_i32 = arith.constant 0 : i32
    %c0_i32_0 = arith.constant 0 : i32
    %c0_i32_1 = arith.constant 0 : i32
    return %c0_i32, %c0_i32_0 : i32, i32
  }
  func.func @transform_5(%arg0: i32) -> (i32, i32) {
    %c0_i32 = arith.constant 0 : i32
    %c0_i32_0 = arith.constant 0 : i32
    %c0_i32_1 = arith.constant 0 : i32
    return %c0_i32, %c0_i32_0 : i32, i32
  }
  func.func @transform_6(%arg0: i32) -> (i32, i32) {
    %c0_i32 = arith.constant 0 : i32
    %c0_i32_0 = arith.constant 0 : i32
    return %arg0, %c0_i32 : i32, i32
  }
  func.func @transform_7(%arg0: i32) -> (i32, i32) {
    %c0_i32 = arith.constant 0 : i32
    %c0_i32_0 = arith.constant 0 : i32
    return %arg0, %c0_i32 : i32, i32
  }
}

</mosaic_0001>

<llo_original>
// kernel: tpu_custom_call.1
$region0: #{tpu_custom_call.1}
  #allocation0 [shape = 'u32[]', space=smem, size = 0x4, offset = 0x4, fixed_abs, tag = 'smem constant byte address 0x4 - core index']
  #allocation1 [shape = 'u32[144,128]{1,0:T(1,128)}', space=vmem, size = 0x12000, scoped, tag = 'internal scratch']
  %s0 = inlined_call_operand.vmem [shape: f32[16,32], index: 0, kind: input, shape index: {}]
  %s1 = inlined_call_operand.hbm [shape: f32[16,32], index: 1, kind: input, shape index: {}, may-alias: {1,6}]
  %s2 = inlined_call_operand.hbm [shape: f32[16,32], index: 2, kind: input, shape index: {}, may-alias: {2,7}]
  %s3 = inlined_call_operand.vmem [shape: bf16[32,128], index: 3, kind: input, shape index: {}]
  %s4 = inlined_call_operand.vmem [shape: bf16[128,64], index: 4, kind: input, shape index: {}]
  %s5 = inlined_call_operand.vmem [shape: f32[1,64], index: 5, kind: input, shape index: {}]
  %s6 = inlined_call_operand.hbm [shape: f32[16,32], index: 6, kind: output, shape index: {0}, may-alias: {1,6}]
  %s7 = inlined_call_operand.hbm [shape: f32[16,32], index: 7, kind: output, shape index: {1}, may-alias: {2,7}]
  %8 = xla_tuple %s6, %s7
  %s9 = sld [smem:[#allocation0]]
  $region73: #{tpu_custom_call.1} parent=0
    _
  %s11 = ssub.s32 1, %s9
  %s12 = scalar_select 0, %s11, %s9
  $region1: #{tpu_custom_call.1} parent=0
    #allocation2 [shape = 'u8[8192]{0}', space=vmem, size = 0x2000, scoped, tag = 'input window, operand 1']
    #allocation3 [shape = 's32[2]{0}', space=sflag, size = 0x8, scoped, tag = 'scoped memory for tpu_custom_call.1']
    #allocation4 [shape = 's32[2]{0}', space=sflag, size = 0x8, scoped, tag = 'scoped memory for tpu_custom_call.1']
    #allocation5 [shape = 'u8[8192]{0}', space=vmem, size = 0x2000, scoped, tag = 'input window, operand 2']
    #allocation6 [shape = 's32[2]{0}', space=sflag, size = 0x8, scoped, tag = 'scoped memory for tpu_custom_call.1']
    #allocation7 [shape = 'u8[8192]{0}', space=vmem, size = 0x2000, scoped, tag = 'output window, operand 0']
    #allocation8 [shape = 'u8[8192]{0}', space=vmem, size = 0x2000, scoped, tag = 'output window, operand 1']
    #allocation9 [shape = 's32[2]{0}', space=sflag, size = 0x8, scoped, tag = 'scoped memory for tpu_custom_call.1']
    %13 = vsyncpa [#allocation3], 0
    %s14 = scalar_lea.sflag [#allocation3], 1
    %15 = vsyncpa %s14, 0
    %16 = vsyncpa [#allocation6], 0
    %s17 = scalar_lea.sflag [#allocation6], 1
    %18 = vsyncpa %s17, 0
    %19 = vsyncpa [#allocation4], 0
    %s20 = scalar_lea.sflag [#allocation4], 1
    %21 = vsyncpa %s20, 0
    %22 = vsyncpa [#allocation9], 0
    %s23 = scalar_lea.sflag [#allocation9], 1
    %24 = vsyncpa %s23, 0
    loop: start=0, step=1, limit=4
    $region2: #{tpu_custom_call.1} parent=1 // loop_pre_header
      _
    $region3: #{tpu_custom_call.1} parent=1 // loop_header
      %s26 = sphi 0, %s30
      %p27 = scmp.ge.s32.totalorder %s26, 4
      %s36 = sphi 0, %s38
      %s39 = sphi 0, %s36
      %s40 = sphi 0, %s39
      %s56 = sphi 0, %s40
      %s62 = sphi 0, %s64
      %s65 = sphi 0, %s62
      %s66 = sphi 0, %s65
      %s82 = sphi 0, %s66
      %s88 = sphi 0, %s90
      %s91 = sphi 0, %s88
      %s92 = sphi 0, %s91
      %s108 = sphi 0, %s92
      %s112 = sphi 0, %s112
      %s114 = sphi 0, %s112
      %s115 = sphi 0, %s114
      %s129 = sphi 0, %s115
      %s133 = sphi 0, %s133
      %s135 = sphi 0, %s133
      %s136 = sphi 0, %s135
      %s150 = sphi 0, %s136
      %s154 = sphi 0, %s154
      %s156 = sphi 0, %s154
      %s157 = sphi 0, %s156
      %s171 = sphi 0, %s157
      %s177 = sphi 0, %s179
      %s180 = sphi 0, %s177
      %s181 = sphi 0, %s180
      %s197 = sphi 0, %s181
      %s203 = sphi 0, %s205
      %s206 = sphi 0, %s203
      %s207 = sphi 0, %s206
      %s223 = sphi 0, %s207
    $region4: #{tpu_custom_call.1} parent=1 // loop_header_branch
      %29 = sbr.rel (%p27) target = $region8
    $region5: #{tpu_custom_call.1} parent=1 // loop_body
      %s31 = ssub.s32 %s26, 1
      %s32 = ssub.s32 %s26, 2
      %s33 = sadd.s32 %s26, 1
      %s34 = ssub.s32 %s26, %s33
      %p35 = scmp.eq.s32.totalorder %s34, 0
      %s37 = sadd.s32 %s36, 1
      %s38 = scalar_select %p35, %s36, %s37
      %p41 = pneg %p35
      %p42 = scmp.eq.s32.totalorder %s26, 1
      %p43 = por %p41, %p42
      %p44 = scmp.ne.s32.totalorder %s36, %s39
      %p45 = scmp.eq.s32.totalorder %s26, 0
      %p46 = por %p44, %p45
      %p47 = scmp.ne.s32.totalorder %s36, %s39
      %p48 = scmp.eq.s32.totalorder %s31, 1
      %p49 = por %p47, %p48
      %p50 = scmp.ne.s32.totalorder %s39, %s40
      %p51 = scmp.eq.s32.totalorder %s31, 0
      %p52 = por %p50, %p51
      %p53 = scmp.ne.s32.totalorder %s39, %s40
      %p54 = scmp.eq.s32.totalorder %s32, 1
      %p55 = por %p53, %p54
      %p57 = scmp.ne.s32.totalorder %s40, %s56
      %p58 = scmp.eq.s32.totalorder %s32, 0
      %p59 = por %p57, %p58
      %s60 = ssub.s32 %s26, %s33
      %p61 = scmp.eq.s32.totalorder %s60, 0
      %s63 = sadd.s32 %s62, 1
      %s64 = scalar_select %p61, %s62, %s63
      %p67 = pneg %p61
      %p68 = scmp.eq.s32.totalorder %s26, 1
      %p69 = por %p67, %p68
      %p70 = scmp.ne.s32.totalorder %s62, %s65
      %p71 = scmp.eq.s32.totalorder %s26, 0
      %p72 = por %p70, %p71
      %p73 = scmp.ne.s32.totalorder %s62, %s65
      %p74 = scmp.eq.s32.totalorder %s31, 1
      %p75 = por %p73, %p74
      %p76 = scmp.ne.s32.totalorder %s65, %s66
      %p77 = scmp.eq.s32.totalorder %s31, 0
      %p78 = por %p76, %p77
      %p79 = scmp.ne.s32.totalorder %s65, %s66
      %p80 = scmp.eq.s32.totalorder %s32, 1
      %p81 = por %p79, %p80
      %p83 = scmp.ne.s32.totalorder %s66, %s82
      %p84 = scmp.eq.s32.totalorder %s32, 0
      %p85 = por %p83, %p84
      %s86 = ssub.s32 %s26, %s33
      %p87 = scmp.eq.s32.totalorder %s86, 0
      %s89 = sadd.s32 %s88, 1
      %s90 = scalar_select %p87, %s88, %s89
      %p93 = pneg %p87
      %p94 = scmp.eq.s32.totalorder %s26, 1
      %p95 = por %p93, %p94
      %p96 = scmp.ne.s32.totalorder %s88, %s91
      %p97 = scmp.eq.s32.totalorder %s26, 0
      %p98 = por %p96, %p97
      %p99 = scmp.ne.s32.totalorder %s88, %s91
      %p100 = scmp.eq.s32.totalorder %s31, 1
      %p101 = por %p99, %p100
      %p102 = scmp.ne.s32.totalorder %s91, %s92
      %p103 = scmp.eq.s32.totalorder %s31, 0
      %p104 = por %p102, %p103
      %p105 = scmp.ne.s32.totalorder %s91, %s92
      %p106 = scmp.eq.s32.totalorder %s32, 1
      %p107 = por %p105, %p106
      %p109 = scmp.ne.s32.totalorder %s92, %s108
      %p110 = scmp.eq.s32.totalorder %s32, 0
      %p111 = por %p109, %p110
      %s113 = sadd.s32 %s112, 1
      %p116 = scmp.eq.s32.totalorder %s26, 1
      %p117 = scmp.ne.s32.totalorder %s112, %s114
      %p118 = scmp.eq.s32.totalorder %s26, 0
      %p119 = por %p117, %p118
      %p120 = scmp.ne.s32.totalorder %s112, %s114
      %p121 = scmp.eq.s32.totalorder %s31, 1
      %p122 = por %p120, %p121
      %p123 = scmp.ne.s32.totalorder %s114, %s115
      %p124 = scmp.eq.s32.totalorder %s31, 0
      %p125 = por %p123, %p124
      %p126 = scmp.ne.s32.totalorder %s114, %s115
      %p127 = scmp.eq.s32.totalorder %s32, 1
      %p128 = por %p126, %p127
      %p130 = scmp.ne.s32.totalorder %s115, %s129
      %p131 = scmp.eq.s32.totalorder %s32, 0
      %p132 = por %p130, %p131
      %s134 = sadd.s32 %s133, 1
      %p137 = scmp.eq.s32.totalorder %s26, 1
      %p138 = scmp.ne.s32.totalorder %s133, %s135
      %p139 = scmp.eq.s32.totalorder %s26, 0
      %p140 = por %p138, %p139
      %p141 = scmp.ne.s32.totalorder %s133, %s135
      %p142 = scmp.eq.s32.totalorder %s31, 1
      %p143 = por %p141, %p142
      %p144 = scmp.ne.s32.totalorder %s135, %s136
      %p145 = scmp.eq.s32.totalorder %s31, 0
      %p146 = por %p144, %p145
      %p147 = scmp.ne.s32.totalorder %s135, %s136
      %p148 = scmp.eq.s32.totalorder %s32, 1
      %p149 = por %p147, %p148
      %p151 = scmp.ne.s32.totalorder %s136, %s150
      %p152 = scmp.eq.s32.totalorder %s32, 0
      %p153 = por %p151, %p152
      %s155 = sadd.s32 %s154, 1
      %p158 = scmp.eq.s32.totalorder %s26, 1
      %p159 = scmp.ne.s32.totalorder %s154, %s156
      %p160 = scmp.eq.s32.totalorder %s26, 0
      %p161 = por %p159, %p160
      %p162 = scmp.ne.s32.totalorder %s154, %s156
      %p163 = scmp.eq.s32.totalorder %s31, 1
      %p164 = por %p162, %p163
      %p165 = scmp.ne.s32.totalorder %s156, %s157
      %p166 = scmp.eq.s32.totalorder %s31, 0
      %p167 = por %p165, %p166
      %p168 = scmp.ne.s32.totalorder %s156, %s157
      %p169 = scmp.eq.s32.totalorder %s32, 1
      %p170 = por %p168, %p169
      %p172 = scmp.ne.s32.totalorder %s157, %s171
      %p173 = scmp.eq.s32.totalorder %s32, 0
      %p174 = por %p172, %p173
      %s175 = ssub.s32 %s26, %s33
      %p176 = scmp.eq.s32.totalorder %s175, 0
      %s178 = sadd.s32 %s177, 1
      %s179 = scalar_select %p176, %s177, %s178
      %p182 = pneg %p176
      %p183 = scmp.eq.s32.totalorder %s26, 1
      %p184 = por %p182, %p183
      %p185 = scmp.ne.s32.totalorder %s177, %s180
      %p186 = scmp.eq.s32.totalorder %s26, 0
      %p187 = por %p185, %p186
      %p188 = scmp.ne.s32.totalorder %s177, %s180
      %p189 = scmp.eq.s32.totalorder %s31, 1
      %p190 = por %p188, %p189
      %p191 = scmp.ne.s32.totalorder %s180, %s181
      %p192 = scmp.eq.s32.totalorder %s31, 0
      %p193 = por %p191, %p192
      %p194 = scmp.ne.s32.totalorder %s180, %s181
      %p195 = scmp.eq.s32.totalorder %s32, 1
      %p196 = por %p194, %p195
      %p198 = scmp.ne.s32.totalorder %s181, %s197
      %p199 = scmp.eq.s32.totalorder %s32, 0
      %p200 = por %p198, %p199
      %s201 = ssub.s32 %s26, %s33
      %p202 = scmp.eq.s32.totalorder %s201, 0
      %s204 = sadd.s32 %s203, 1
      %s205 = scalar_select %p202, %s203, %s204
      %p208 = pneg %p202
      %p209 = scmp.eq.s32.totalorder %s26, 1
      %p210 = por %p208, %p209
      %p211 = scmp.ne.s32.totalorder %s203, %s206
      %p212 = scmp.eq.s32.totalorder %s26, 0
      %p213 = por %p211, %p212
      %p214 = scmp.ne.s32.totalorder %s203, %s206
      %p215 = scmp.eq.s32.totalorder %s31, 1
      %p216 = por %p214, %p215
      %p217 = scmp.ne.s32.totalorder %s206, %s207
      %p218 = scmp.eq.s32.totalorder %s31, 0
      %p219 = por %p217, %p218
      %p220 = scmp.ne.s32.totalorder %s206, %s207
      %p221 = scmp.eq.s32.totalorder %s32, 1
      %p222 = por %p220, %p221
      %p224 = scmp.ne.s32.totalorder %s207, %s223
      %p225 = scmp.eq.s32.totalorder %s32, 0
      %p226 = por %p224, %p225
      %p227 = scmp.le.s32.totalorder 1, %s26
      %p228 = scmp.lt.s32.totalorder %s26, 3
      %p229 = pnand %p227, %p228
      %p230 = pneg %p229
      // Predicated region
      $region9: #{tpu_custom_call.1} parent=5 // pred_check
        _
      $region10: #{tpu_custom_call.1} parent=5 // pred_check_branch
        %232 = sbr.rel (%p229) target = $region12
      $region11: #{tpu_custom_call.1} parent=5 // pred_region
        %s233 = ssub.s32 %s26, 1
        // Predicated region
        $region13: #{tpu_custom_call.1} parent=11 // pred_check
          %p234 = pneg %p125
        $region14: #{tpu_custom_call.1} parent=11 // pred_check_branch
          %236 = sbr.rel (%p234) target = $region16
        $region15: #{tpu_custom_call.1} parent=11 // pred_region
          _
        $region16: #{tpu_custom_call.1} parent=11 // pred_fallthru
          _
        // Predicated region
        $region17: #{tpu_custom_call.1} parent=11 // pred_check
          %p237 = pneg %p146
        $region18: #{tpu_custom_call.1} parent=11 // pred_check_branch
          %239 = sbr.rel (%p237) target = $region20
        $region19: #{tpu_custom_call.1} parent=11 // pred_region
          _
        $region20: #{tpu_custom_call.1} parent=11 // pred_fallthru
          _
        // Predicated region
        $region21: #{tpu_custom_call.1} parent=11 // pred_check
          %p240 = pneg %p167
        $region22: #{tpu_custom_call.1} parent=11 // pred_check_branch
          %242 = sbr.rel (%p240) target = $region24
        $region23: #{tpu_custom_call.1} parent=11 // pred_region
          _
        $region24: #{tpu_custom_call.1} parent=11 // pred_fallthru
          _
      $region12: #{tpu_custom_call.1} parent=5 // pred_fallthru
        _
      %p243 = scmp.lt.s32.totalorder %s26, 2
      // Predicated region
      $region25: #{tpu_custom_call.1} parent=5 // pred_check
        %p244 = pneg %p243
      $region26: #{tpu_custom_call.1} parent=5 // pred_check_branch
        %246 = sbr.rel (%p244) target = $region28
      $region27: #{tpu_custom_call.1} parent=5 // pred_region
        // Predicated region
        $region29: #{tpu_custom_call.1} parent=27 // pred_check
          %p247 = pneg %p46
        $region30: #{tpu_custom_call.1} parent=27 // pred_check_branch
          %249 = sbr.rel (%p247) target = $region32
        $region31: #{tpu_custom_call.1} parent=27 // pred_region
          %p250 = scmp.lt.s32.totalorder %s26, 1
          %s251 = scalar_select %p250, %s26, 1
          %s252 = smul.addr %s251, 8
          %s253 = scalar_lea.vmem %s0, %s252
        $region32: #{tpu_custom_call.1} parent=27 // pred_fallthru
          _
        // Predicated region
        $region33: #{tpu_custom_call.1} parent=27 // pred_check
          %p254 = pneg %p72
        $region34: #{tpu_custom_call.1} parent=27 // pred_check_branch
          %256 = sbr.rel (%p254) target = $region36
        $region35: #{tpu_custom_call.1} parent=27 // pred_region
          %s257 = sand.u32 %s62, 1
          %s258 = scalar_lea.sflag [#allocation3], %s257
          %s259 = sand.u32 %s62, 1
          %s260 = smul.addr %s259, 8
          %s261 = scalar_lea.vmem [#allocation2], %s260
          %s263 = ssub.s32 128, 128
          %264 = vsyncadd %s258, %s263
          %s265 = smul.addr %s26, 128
          %s266 = scalar_lea.hbm %s1, %s265
          %s268 = sshll.u32 %s261, 4
          %s269 = int_to_ptr.vmem [resolvable:$true] %s268
          %271 = dma.hbm_to_vmem [thread:$0]  %s266, 128, %s269, %s258
        $region36: #{tpu_custom_call.1} parent=27 // pred_fallthru
          _
        // Predicated region
        $region37: #{tpu_custom_call.1} parent=27 // pred_check
          %p272 = pneg %p98
        $region38: #{tpu_custom_call.1} parent=27 // pred_check_branch
          %274 = sbr.rel (%p272) target = $region40
        $region39: #{tpu_custom_call.1} parent=27 // pred_region
          %s275 = sand.u32 %s88, 1
          %s276 = scalar_lea.sflag [#allocation6], %s275
          %s277 = sand.u32 %s88, 1
          %s278 = smul.addr %s277, 8
          %s279 = scalar_lea.vmem [#allocation5], %s278
          %s281 = ssub.s32 128, 128
          %282 = vsyncadd %s276, %s281
          %s283 = smul.addr %s26, 128
          %s284 = scalar_lea.hbm %s2, %s283
          %s286 = sshll.u32 %s279, 4
          %s287 = int_to_ptr.vmem [resolvable:$true] %s286
          %289 = dma.hbm_to_vmem [thread:$0]  %s284, 128, %s287, %s276
        $region40: #{tpu_custom_call.1} parent=27 // pred_fallthru
          _
      $region28: #{tpu_custom_call.1} parent=5 // pred_fallthru
        _
      %p290 = scmp.le.s32.totalorder 1, %s26
      %p291 = scmp.lt.s32.totalorder %s26, 3
      %p292 = pnand %p290, %p291
      %p293 = pneg %p292
      // Predicated region
      $region41: #{tpu_custom_call.1} parent=5 // pred_check
        _
      $region42: #{tpu_custom_call.1} parent=5 // pred_check_branch
        %295 = sbr.rel (%p292) target = $region44
      $region43: #{tpu_custom_call.1} parent=5 // pred_region
        %s296 = ssub.s32 %s26, 1
        %s297 = sand.u32 %s65, 1
        %s298 = scalar_lea.sflag [#allocation3], %s297
        %s299 = sand.u32 %s65, 1
        %s300 = smul.addr %s299, 8
        %s301 = scalar_lea.vmem [#allocation2], %s300
        // Predicated region
        $region45: #{tpu_custom_call.1} parent=43 // pred_check
          %p302 = pneg %p78
        $region46: #{tpu_custom_call.1} parent=43 // pred_check_branch
          %304 = sbr.rel (%p302) target = $region48
        $region47: #{tpu_custom_call.1} parent=43 // pred_region
          %305 = dma.done %s298, 128
        $region48: #{tpu_custom_call.1} parent=43 // pred_fallthru
          _
        %s306 = sand.u32 %s91, 1
        %s307 = scalar_lea.sflag [#allocation6], %s306
        %s308 = sand.u32 %s91, 1
        %s309 = smul.addr %s308, 8
        %s310 = scalar_lea.vmem [#allocation5], %s309
        // Predicated region
        $region49: #{tpu_custom_call.1} parent=43 // pred_check
          %p311 = pneg %p104
        $region50: #{tpu_custom_call.1} parent=43 // pred_check_branch
          %313 = sbr.rel (%p311) target = $region52
        $region51: #{tpu_custom_call.1} parent=43 // pred_region
          %314 = dma.done %s307, 128
        $region52: #{tpu_custom_call.1} parent=43 // pred_fallthru
          _
        %p315 = scmp.lt.s32.totalorder %s31, 1
        %s316 = scalar_select %p315, %s31, 1
        %s317 = smul.addr %s316, 8
        %s318 = scalar_lea.vmem %s0, %s317
        %p319 = pneg %p52
        %p320 = pneg %p49
        %s321 = sand.u32 %s65, 1
        %s322 = scalar_lea.sflag [#allocation3], %s321
        %s323 = sand.u32 %s65, 1
        %s324 = smul.addr %s323, 8
        %s325 = scalar_lea.vmem [#allocation2], %s324
        %p326 = pneg %p78
        %p327 = pneg %p75
        %s328 = sand.u32 %s91, 1
        %s329 = scalar_lea.sflag [#allocation6], %s328
        %s330 = sand.u32 %s91, 1
        %s331 = smul.addr %s330, 8
        %s332 = scalar_lea.vmem [#allocation5], %s331
        %p333 = pneg %p104
        %p334 = pneg %p101
        %p335 = pneg %p125
        %p336 = pneg %p122
        %p337 = pneg %p146
        %p338 = pneg %p143
        %p339 = pneg %p167
        %p340 = pneg %p164
        %p341 = pneg %p193
        %p342 = pneg %p190
        %s343 = sand.u32 %s180, 1
        %s344 = scalar_lea.sflag [#allocation4], %s343
        %s345 = sand.u32 %s180, 1
        %s346 = smul.addr %s345, 8
        %s347 = scalar_lea.vmem [#allocation7], %s346
        %p348 = pneg %p219
        %p349 = pneg %p216
        %s350 = sand.u32 %s206, 1
        %s351 = scalar_lea.sflag [#allocation9], %s350
        %s352 = sand.u32 %s206, 1
        %s353 = smul.addr %s352, 8
        %s354 = scalar_lea.vmem [#allocation8], %s353
        %p355 = scmp.lt.s32.totalorder %s31, 1
        %s356 = scalar_select %p355, %s31, 1
        %s357 = smul.addr %s356, 8
        %s358 = scalar_lea.vmem %s0, %s357
        %v360 = vld [vmem:[%s358] sm:$0xff]
        %v361 = vpack.c.bf16 %v360, %v360
        %v362 = vld [vmem:[%s3] sm:$0xf]
        %v363 = vld [vmem:[%s3 + $0x4] sm:$0xf]
        %v364 = vld [vmem:[%s3 + $0x8] sm:$0xf]
        %v365 = vld [vmem:[%s3 + $0xc] sm:$0xf]
        %v370 = vunpack.c.l.b16 %v362
        %v371 = vunpack.c.l.b16 %v363
        %v372 = vunpack.c.l.b16 %v364
        %v373 = vunpack.c.l.b16 %v365
        %v374 = vpack.c.b16 %v371, %v370
        %v375 = vpack.c.b16 %v373, %v372
        %vm378 = vcmask 261120
        %v380 = vsel %vm378, %v361, 0
        %382 = vmatprep.subr.bf16.mxu0 0
        %383 = vmatpush1.bf16.msra.mxu0 %v374
        %384 = vmatprep.subr.bf16.mxu0 0
        %385 = vmatpush1.bf16.msra.mxu0 %v375
        %386 = vmatprep.subr.bf16.mxu0 0
        %387 = vmatpush1.bf16.msra.mxu0 0
        %388 = vmatprep.subr.bf16.mxu0 0
        %389 = vmatpush1.bf16.msra.mxu0 0
        %390 = vmatprep.subr.bf16.mxu0 0
        %391 = vmatpush1.bf16.msra.mxu0 0
        %392 = vmatprep.subr.bf16.mxu0 0
        %393 = vmatpush1.bf16.msra.mxu0 0
        %394 = vmatprep.subr.bf16.mxu0 0
        %395 = vmatpush1.bf16.msra.mxu0 0
        %396 = vmatprep.subr.bf16.mxu0 0
        %397 = vmatpush1.bf16.msra.mxu0 0
        %398 = vmatprep.subr.bf16.mxu0 0
        %399 = vmatpush1.bf16.msra.mxu0 0
        %400 = vmatprep.subr.bf16.mxu0 0
        %401 = vmatpush1.bf16.msra.mxu0 0
        %402 = vmatprep.subr.bf16.mxu0 0
        %403 = vmatpush1.bf16.msra.mxu0 0
        %404 = vmatprep.subr.bf16.mxu0 0
        %405 = vmatpush1.bf16.msra.mxu0 0
        %406 = vmatprep.subr.bf16.mxu0 0
        %407 = vmatpush1.bf16.msra.mxu0 0
        %408 = vmatprep.subr.bf16.mxu0 0
        %409 = vmatpush1.bf16.msra.mxu0 0
        %410 = vmatprep.subr.bf16.mxu0 0
        %411 = vmatpush1.bf16.msra.mxu0 0
        %412 = vmatprep.subr.bf16.mxu0 0
        %413 = vmatpush1.bf16.msra.mxu0 0
        %414 = vmatprep.mubr.bf16.mxu0 0
        %415 = vmatmul.mubr.bf16.gmra.mrb[0].mxu0 %v380
        %v416 = vpop.f32.mrb[0].mxu0
        %v417 = vadd.f32 0.0, %v416
        %v418 = vpop.f32.mrb[0].mxu0
        %v419 = vpop.f32.mrb[0].mxu0
        %v420 = vpop.f32.mrb[0].mxu0
        %421 = vdwg.mxu0
        %v422 = vpack.c.bf16 %v417, %v417
        %v423 = vld [vmem:[%s4] sm:$0xf]
        %v424 = vld [vmem:[%s4 + $0x4] sm:$0xf]
        %v425 = vld [vmem:[%s4 + $0x8] sm:$0xf]
        %v426 = vld [vmem:[%s4 + $0xc] sm:$0xf]
        %v427 = vld [vmem:[%s4 + $0x10] sm:$0xf]
        %v428 = vld [vmem:[%s4 + $0x14] sm:$0xf]
        %v429 = vld [vmem:[%s4 + $0x18] sm:$0xf]
        %v430 = vld [vmem:[%s4 + $0x1c] sm:$0xf]
        %v431 = vld [vmem:[%s4 + $0x20] sm:$0xf]
        %v432 = vld [vmem:[%s4 + $0x24] sm:$0xf]
        %v433 = vld [vmem:[%s4 + $0x28] sm:$0xf]
        %v434 = vld [vmem:[%s4 + $0x2c] sm:$0xf]
        %v435 = vld [vmem:[%s4 + $0x30] sm:$0xf]
        %v436 = vld [vmem:[%s4 + $0x34] sm:$0xf]
        %v437 = vld [vmem:[%s4 + $0x38] sm:$0xf]
        %v438 = vld [vmem:[%s4 + $0x3c] sm:$0xf]
        %v439 = vld [vmem:[%s5] sm:$0x1]
        %v441 = vlaneseq
        %v442 = vshrl.u32 %v441, 7
        %v443 = vsub.s32 0, %v442
        %v444 = vrot.slane %v439, %v443
        %v462 = vunpack.c.l.b16 %v423
        %v463 = vunpack.c.l.b16 %v424
        %v464 = vunpack.c.l.b16 %v425
        %v465 = vunpack.c.l.b16 %v426
        %v466 = vunpack.c.l.b16 %v427
        %v467 = vunpack.c.l.b16 %v428
        %v468 = vunpack.c.l.b16 %v429
        %v469 = vunpack.c.l.b16 %v430
        %v470 = vunpack.c.l.b16 %v431
        %v471 = vunpack.c.l.b16 %v432
        %v472 = vunpack.c.l.b16 %v433
        %v473 = vunpack.c.l.b16 %v434
        %v474 = vunpack.c.l.b16 %v435
        %v475 = vunpack.c.l.b16 %v436
        %v476 = vunpack.c.l.b16 %v437
        %v477 = vunpack.c.l.b16 %v438
        %v478 = vpack.c.b16 %v463, %v462
        %v479 = vpack.c.b16 %v465, %v464
        %v480 = vpack.c.b16 %v467, %v466
        %v481 = vpack.c.b16 %v469, %v468
        %v482 = vpack.c.b16 %v471, %v470
        %v483 = vpack.c.b16 %v473, %v472
        %v484 = vpack.c.b16 %v475, %v474
        %v485 = vpack.c.b16 %v477, %v476
        %494 = vmatprep.subr.bf16.mxu0 0
        %495 = vmatpush1.bf16.msra.mxu0 %v478
        %496 = vmatprep.subr.bf16.mxu0 0
        %497 = vmatpush1.bf16.msra.mxu0 %v479
        %498 = vmatprep.subr.bf16.mxu0 0
        %499 = vmatpush1.bf16.msra.mxu0 %v480
        %500 = vmatprep.subr.bf16.mxu0 0
        %501 = vmatpush1.bf16.msra.mxu0 %v481
        %502 = vmatprep.subr.bf16.mxu0 0
        %503 = vmatpush1.bf16.msra.mxu0 %v482
        %504 = vmatprep.subr.bf16.mxu0 0
        %505 = vmatpush1.bf16.msra.mxu0 %v483
        %506 = vmatprep.subr.bf16.mxu0 0
        %507 = vmatpush1.bf16.msra.mxu0 %v484
        %508 = vmatprep.subr.bf16.mxu0 0
        %509 = vmatpush1.bf16.msra.mxu0 %v485
        %510 = vmatprep.subr.bf16.mxu0 0
        %511 = vmatpush1.bf16.msra.mxu0 0
        %512 = vmatprep.subr.bf16.mxu0 0
        %513 = vmatpush1.bf16.msra.mxu0 0
        %514 = vmatprep.subr.bf16.mxu0 0
        %515 = vmatpush1.bf16.msra.mxu0 0
        %516 = vmatprep.subr.bf16.mxu0 0
        %517 = vmatpush1.bf16.msra.mxu0 0
        %518 = vmatprep.subr.bf16.mxu0 0
        %519 = vmatpush1.bf16.msra.mxu0 0
        %520 = vmatprep.subr.bf16.mxu0 0
        %521 = vmatpush1.bf16.msra.mxu0 0
        %522 = vmatprep.subr.bf16.mxu0 0
        %523 = vmatpush1.bf16.msra.mxu0 0
        %524 = vmatprep.subr.bf16.mxu0 0
        %525 = vmatpush1.bf16.msra.mxu0 0
        %526 = vmatprep.mubr.bf16.mxu0 0
        %527 = vmatmul.mubr.bf16.gmra.mrb[0].mxu0 %v422
        %v528 = vpop.f32.mrb[0].mxu0
        %v529 = vadd.f32 %v444, %v528
        %v530 = vpop.f32.mrb[0].mxu0
        %v531 = vpop.f32.mrb[0].mxu0
        %v532 = vpop.f32.mrb[0].mxu0
        %533 = vdwg.mxu0
        %v534 = vld [vmem:[%s301] sm:$0xff]
        %v535 = vadd.f32 %v534, %v529
        %536 = vst.msk [vmem:[%s347] sm:$0xff] %vm378, %v535
        %v537 = vld [vmem:[%s310] sm:$0xff]
        %539 = vrot.lane.b32.xlu0 %v529, 96
        %v540 = vpop.permute.xlu0 %539
        %v542 = vadd.f32 %v537, %v540
        %543 = vst.msk [vmem:[%s354] sm:$0xff] %vm378, %v542
        %s544 = sand.u32 %s180, 1
        %s545 = scalar_lea.sflag [#allocation4], %s544
        %s546 = sand.u32 %s180, 1
        %s547 = smul.addr %s546, 8
        %s548 = scalar_lea.vmem [#allocation7], %s547
        %s549 = sand.u32 %s206, 1
        %s550 = scalar_lea.sflag [#allocation9], %s549
        %s551 = sand.u32 %s206, 1
        %s552 = smul.addr %s551, 8
        %s553 = scalar_lea.vmem [#allocation8], %s552
        // Predicated region
        $region53: #{tpu_custom_call.1} parent=43 // pred_check
          %p554 = pneg %p190
        $region54: #{tpu_custom_call.1} parent=43 // pred_check_branch
          %556 = sbr.rel (%p554) target = $region56
        $region55: #{tpu_custom_call.1} parent=43 // pred_region
          %s558 = ssub.s32 128, 128
          %559 = vsyncadd %s545, %s558
          %s560 = smul.addr %s31, 128
          %s561 = scalar_lea.hbm %s6, %s560
          %s563 = sshll.u32 %s548, 4
          %s564 = int_to_ptr.vmem [resolvable:$true] %s563
          %566 = dma.vmem_to_hbm [thread:$0]  %s564, 128, %s561, %s545
        $region56: #{tpu_custom_call.1} parent=43 // pred_fallthru
          _
        // Predicated region
        $region57: #{tpu_custom_call.1} parent=43 // pred_check
          %p567 = pneg %p216
        $region58: #{tpu_custom_call.1} parent=43 // pred_check_branch
          %569 = sbr.rel (%p567) target = $region60
        $region59: #{tpu_custom_call.1} parent=43 // pred_region
          %s571 = ssub.s32 128, 128
          %572 = vsyncadd %s550, %s571
          %s573 = smul.addr %s31, 128
          %s574 = scalar_lea.hbm %s7, %s573
          %s576 = sshll.u32 %s553, 4
          %s577 = int_to_ptr.vmem [resolvable:$true] %s576
          %579 = dma.vmem_to_hbm [thread:$0]  %s577, 128, %s574, %s550
        $region60: #{tpu_custom_call.1} parent=43 // pred_fallthru
          _
      $region44: #{tpu_custom_call.1} parent=5 // pred_fallthru
        _
      %p580 = scmp.le.s32.totalorder 2, %s26
      // Predicated region
      $region61: #{tpu_custom_call.1} parent=5 // pred_check
        %p581 = pneg %p580
      $region62: #{tpu_custom_call.1} parent=5 // pred_check_branch
        %583 = sbr.rel (%p581) target = $region64
      $region63: #{tpu_custom_call.1} parent=5 // pred_region
        %s584 = ssub.s32 %s26, 2
        // Predicated region
        $region65: #{tpu_custom_call.1} parent=63 // pred_check
          %p585 = pneg %p196
        $region66: #{tpu_custom_call.1} parent=63 // pred_check_branch
          %587 = sbr.rel (%p585) target = $region68
        $region67: #{tpu_custom_call.1} parent=63 // pred_region
          %s588 = sand.u32 %s181, 1
          %s589 = scalar_lea.sflag [#allocation4], %s588
          %s590 = sand.u32 %s181, 1
          %s591 = smul.addr %s590, 8
          %s592 = scalar_lea.vmem [#allocation7], %s591
          %593 = dma.done %s589, 128
        $region68: #{tpu_custom_call.1} parent=63 // pred_fallthru
          _
        // Predicated region
        $region69: #{tpu_custom_call.1} parent=63 // pred_check
          %p594 = pneg %p222
        $region70: #{tpu_custom_call.1} parent=63 // pred_check_branch
          %596 = sbr.rel (%p594) target = $region72
        $region71: #{tpu_custom_call.1} parent=63 // pred_region
          %s597 = sand.u32 %s207, 1
          %s598 = scalar_lea.sflag [#allocation9], %s597
          %s599 = sand.u32 %s207, 1
          %s600 = smul.addr %s599, 8
          %s601 = scalar_lea.vmem [#allocation8], %s600
          %602 = dma.done %s598, 128
        $region72: #{tpu_custom_call.1} parent=63 // pred_fallthru
          _
      $region64: #{tpu_custom_call.1} parent=5 // pred_fallthru
        _
    $region6: #{tpu_custom_call.1} parent=1 // loop_footer
      %s30 = sadd.s32 1, %s26
    $region7: #{tpu_custom_call.1} parent=1 // loop_footer_branch
      %25 = sbr.rel target = $region3
    $region8: #{tpu_custom_call.1} parent=1 // loop_exit
      _
    %603 = vsyncpa [#allocation3], 1
    %s604 = scalar_lea.sflag [#allocation3], 1
    %605 = vsyncpa %s604, 1
    %606 = vsyncpa [#allocation6], 1
    %s607 = scalar_lea.sflag [#allocation6], 1
    %608 = vsyncpa %s607, 1
    %609 = vsyncpa [#allocation4], 1
    %s610 = scalar_lea.sflag [#allocation4], 1
    %611 = vsyncpa %s610, 1
    %612 = vsyncpa [#allocation9], 1
    %s613 = scalar_lea.sflag [#allocation9], 1
    %614 = vsyncpa %s613, 1

</llo_original>
